<compile_context>
chip_gen: v5e
topology: v5e:2x2
jax: 0.10.0
libtpu: 0.0.40
codegen_flags: <defaults>
</compile_context>

<pallas_src>
import math

import jax
import jax.numpy as jnp
from jax.experimental import pallas as pl
from jax.experimental.pallas import tpu as pltpu

# ----------------------------- config ---------------------------------------
N_EMBD = 32
N_HEAD = 4
HEAD_DIM = N_EMBD // N_HEAD
BLOCK_SIZE = 8          # max sequence length (== T below)
DROPOUT = 0.0           # identity in this kernel
NEG_INF = -1e30         # finite "minus infinity" (NaN-safe: diagonal always kept)


# ----------------------------- kernel ---------------------------------------
def _make_kernel(B, T, C):
    """Build the single-step kernel for a (B, T, C) input (all static)."""
    H, hd = N_HEAD, HEAD_DIM
    N = B * T
    assert (T & (T - 1)) == 0, "in-kernel mask uses shifts; T must be a power of 2"
    log2_t = T.bit_length() - 1

    def kernel(x_ref, w_ref, o_ref):
        # x_ref: (N, C)        bf16 activations, N = B*T flattened rows
        # w_ref: (H, C+hd, C)  bf16 weight slab:
        #          rows [0, C)    : fused per-head qkv weights, q pre-scaled by
        #                           1/sqrt(hd), lane-padded from 3*hd to C
        #          rows [C, C+hd) : per-head output-projection weights
        # o_ref: (N, C)        output
        x = x_ref[...]                                    # (N, C) bf16
        xb = jnp.broadcast_to(x, (H, N, C))               # cheap leading-dim bcast

        wqkv = w_ref[:, 0:C, :]                           # (H, C, C) (lanes >= 3*hd)
        wp = w_ref[:, C:C + hd, :]                        # (H, hd, C)

        # One fused per-head QKV projection (bf16 MXU operands, f32 accumulate).
        qkv = jnp.einsum('hnc,hcd->hnd', xb, wqkv,
                         preferred_element_type=jnp.float32)   # (H, N, C) f32
        q = qkv[:, :, 0:hd]                               # scale already folded in
        k = qkv[:, :, hd:2 * hd]
        v = qkv[:, :, 2 * hd:3 * hd]

        # Scores over the flattened token axis.
        # TODO(synk): at real sizes, check with pl.lower_as_mlir whether this
        # lane-dim contraction inserts per-head transposes of k; if so, emit k
        # pre-transposed (H, hd, N) straight from the projection instead.
        att = jnp.einsum('hnd,hmd->hnm', q, k,
                         preferred_element_type=jnp.float32)   # (H, N, N)

        # Mask built in-kernel from iota (no O(N^2) bias operand / DMA):
        # keep = same-batch AND causal. Every row keeps its diagonal, so the
        # finite -1e30 fill can never produce a NaN row.
        row = jax.lax.broadcasted_iota(jnp.int32, (N, N), 0)
        col = jax.lax.broadcasted_iota(jnp.int32, (N, N), 1)
        keep = ((row >> log2_t) == (col >> log2_t)) & (col <= row)
        att = jnp.where(keep[None, :, :], att, NEG_INF)

        # Numerically-stable softmax; math kept in f32 (v5e has no bf16 VPU/EUP).
        m = jnp.max(att, axis=-1, keepdims=True)
        p = jnp.exp(att - m)
        denom = jnp.sum(p, axis=-1, keepdims=True)
        probs = p * pl.reciprocal(denom, approx=True)     # EUP slot, VALU-free
        # attn_dropout: identity (DROPOUT == 0.0)
        # TODO(synk): dropout > 0 would need pltpu.prng_seed / prng_random_bits.

        y = jnp.einsum('hnm,hmd->hnd', probs, v,
                       preferred_element_type=jnp.float32)     # (H, N, hd)

        # Output projection with the head merge folded in: per-head partials
        # summed over the leading axis (plain vreg adds, zero transposes).
        # TODO(synk): fuse into a single 'hnd,hdc->nc' contraction if/when the
        # Mosaic dot_general lowering accepts two contracting dims.
        out_h = jnp.einsum('hnd,hdc->hnc', y.astype(wp.dtype), wp,
                           preferred_element_type=jnp.float32)  # (H, N, C)
        out = jnp.sum(out_h, axis=0)                            # (N, C)
        # resid_dropout: identity (DROPOUT == 0.0)
        o_ref[...] = out.astype(o_ref.dtype)

    return kernel


# ----------------------------- wrapper ---------------------------------------
def _prep_weights(w_attn, w_proj):
    """Torch-layout (out, in) weights -> one bf16 per-head slab (free, XLA-side)."""
    C = w_proj.shape[0]
    H, hd = N_HEAD, HEAD_DIM
    assert 3 * hd <= C, "slab layout assumes 3*head_dim <= n_embd"
    wq, wk, wv = jnp.split(w_attn, 3, axis=0)                   # each (C, C), (out,in)

    def per_head(w):                                            # x @ w.T, head-major
        return jnp.transpose(w.T.reshape(C, H, hd), (1, 0, 2))  # (H, C, hd)

    wq_h = per_head(wq) * (1.0 / math.sqrt(hd))                 # fold attention scale
    w_qkv = jnp.concatenate([wq_h, per_head(wk), per_head(wv)], axis=-1)  # (H, C, 3hd)
    w_qkv = jnp.pad(w_qkv, ((0, 0), (0, 0), (0, C - 3 * hd)))   # lane-match wp
    wp_h = w_proj.T.reshape(H, hd, C)                           # (H, hd, C)
    slab = jnp.concatenate([w_qkv, wp_h], axis=1)               # (H, C + hd, C)
    return slab.astype(jnp.bfloat16)


@jax.jit
def causal_self_attention(x, w_attn, w_proj):
    """x: (B, T, C); w_attn: (3C, C) torch (out,in); w_proj: (C, C) torch (out,in)."""
    B, T, C = x.shape
    w_slab = _prep_weights(w_attn, w_proj)
    x2d = x.reshape(B * T, C).astype(jnp.bfloat16)

    vmem = pl.BlockSpec(memory_space=pltpu.MemorySpace.VMEM)
    out2d = pl.pallas_call(
        _make_kernel(B, T, C),
        out_shape=jax.ShapeDtypeStruct((B * T, C), x.dtype),
        in_specs=[vmem, vmem],
        out_specs=vmem,
        # No grid: one fat step, whole working set (~10 KB) resident in VMEM, so
        # there is no per-step pipeline overhead and only 3 DMAs (x, W, out).
        # TODO(synk): at non-toy B*T add a "parallel" grid over the query axis
        # (flash-style tiles) so v7x's second TensorCore is used, and set
        # pltpu.CompilerParams(vmem_limit_bytes=...) for its 64 MiB VMEM.
    )(x2d, w_slab)
    return out2d.reshape(B, T, C)


# ----------------------------- reference -------------------------------------
def _reference(x, w_attn, w_proj):
    B, T, C = x.shape
    qkv = x @ w_attn.T
    q, k, v = jnp.split(qkv, 3, axis=-1)

    def heads(t):
        return t.reshape(B, T, N_HEAD, HEAD_DIM).transpose(0, 2, 1, 3)

    q, k, v = heads(q), heads(k), heads(v)
    att = (q @ jnp.swapaxes(k, -2, -1)) * (1.0 / math.sqrt(HEAD_DIM))
    mask = jnp.tril(jnp.ones((T, T), dtype=bool))
    att = jnp.where(mask[None, None], att, -jnp.inf)
    att = jax.nn.softmax(att, axis=-1)
    y = (att @ v).transpose(0, 2, 1, 3).reshape(B, T, C)
    return y @ w_proj.T


# ----------------------------- main -------------------------------------------
if __name__ == "__main__":
    key = jax.random.PRNGKey(0)
    kx, ka, kp = jax.random.split(key, 3)

    B, T, C = 2, BLOCK_SIZE, N_EMBD
    x = jax.random.normal(kx, (B, T, C), dtype=jnp.float32)
    # torch nn.Linear weights are (out_features, in_features)
    w_attn = 0.02 * jax.random.normal(ka, (3 * C, C), dtype=jnp.float32)
    w_proj = 0.02 * jax.random.normal(kp, (C, C), dtype=jnp.float32)

    out = jax.block_until_ready(causal_self_attention(x, w_attn, w_proj))

    ref = _reference(x, w_attn, w_proj)
    assert out.shape == (B, T, C)
    # tolerance covers bf16 MXU operands + the approximate (EUP) reciprocal
    err = float(jnp.max(jnp.abs(out - ref)))
    assert jnp.allclose(out, ref, atol=2e-3, rtol=2e-3), (
        f"mismatch vs reference; max abs err = {err}")

    print("KERNEL_OK")
</pallas_src>

<mosaic_0001>
module attributes {stable_mosaic.version = 11 : i64} {
  func.func @kernel(%arg0: memref<16x32xbf16, #tpu.memory_space<vmem>>, %arg1: memref<4x40x32xbf16, #tpu.memory_space<vmem>>, %arg2: memref<16x32xf32, #tpu.memory_space<vmem>>) attributes {dimension_semantics = [], scalar_prefetch = 0 : i64, scratch_operands = 0 : i64, tpu.core_type = #tpu.core_type<tc>} {
    %c0 = arith.constant 0 : index
    %c0_0 = arith.constant 0 : index
    %0 = vector.load %arg0[%c0, %c0_0] : memref<16x32xbf16, #tpu.memory_space<vmem>>, vector<16x32xbf16>
    %1 = vector.shape_cast %0 : vector<16x32xbf16> to vector<1x16x32xbf16>
    %2 = vector.broadcast %1 : vector<1x16x32xbf16> to vector<4x16x32xbf16>
    %c0_1 = arith.constant 0 : index
    %c0_2 = arith.constant 0 : index
    %c0_3 = arith.constant 0 : index
    %3 = vector.load %arg1[%c0_1, %c0_2, %c0_3] : memref<4x40x32xbf16, #tpu.memory_space<vmem>>, vector<4x32x32xbf16>
    %c0_4 = arith.constant 0 : index
    %c32 = arith.constant 32 : index
    %c0_5 = arith.constant 0 : index
    %4 = vector.load %arg1[%c0_4, %c32, %c0_5] : memref<4x40x32xbf16, #tpu.memory_space<vmem>>, vector<4x8x32xbf16>
    "tpu.trace_start"() <{level = 10 : i32, message = "hnc,hcd->hnd"}> : () -> ()
    %cst = arith.constant dense<0.000000e+00> : vector<4x16x32xf32>
    %5 = tpu.matmul %2, %3, %cst {dimension_numbers = #tpu.dot_dimension_numbers<[2], [1], [1], [2], [0, 0, 0, 1, 1, 2], [0], [0]>} : vector<4x16x32xbf16>, vector<4x32x32xbf16>, vector<4x16x32xf32> -> vector<4x16x32xf32>
    "tpu.trace_stop"() : () -> ()
    %6 = vector.extract_strided_slice %5 {offsets = [0, 0, 0], sizes = [4, 16, 8], strides = [1, 1, 1]} : vector<4x16x32xf32> to vector<4x16x8xf32>
    %7 = vector.extract_strided_slice %5 {offsets = [0, 0, 8], sizes = [4, 16, 8], strides = [1, 1, 1]} : vector<4x16x32xf32> to vector<4x16x8xf32>
    %8 = vector.extract_strided_slice %5 {offsets = [0, 0, 16], sizes = [4, 16, 8], strides = [1, 1, 1]} : vector<4x16x32xf32> to vector<4x16x8xf32>
    "tpu.trace_start"() <{level = 10 : i32, message = "hnd,hmd->hnm"}> : () -> ()
    %cst_6 = arith.constant dense<0.000000e+00> : vector<4x16x16xf32>
    %9 = tpu.matmul %6, %7, %cst_6 {dimension_numbers = #tpu.dot_dimension_numbers<[2], [2], [1], [1], [0, 0, 0, 1, 1, 1], [0], [0]>} : vector<4x16x8xf32>, vector<4x16x8xf32>, vector<4x16x16xf32> -> vector<4x16x16xf32>
    "tpu.trace_stop"() : () -> ()
    %10 = tpu.iota {dimensions = array<i32: 0>} : vector<16x16xi32>
    %11 = tpu.iota {dimensions = array<i32: 1>} : vector<16x16xi32>
    %c3_i32 = arith.constant 3 : i32
    %12 = vector.broadcast %c3_i32 : i32 to vector<16x16xi32>
    %13 = arith.shrsi %10, %12 : vector<16x16xi32>
    %c3_i32_7 = arith.constant 3 : i32
    %14 = vector.broadcast %c3_i32_7 : i32 to vector<16x16xi32>
    %15 = arith.shrsi %11, %14 : vector<16x16xi32>
    %16 = arith.cmpi eq, %13, %15 : vector<16x16xi32>
    %17 = arith.cmpi sle, %11, %10 : vector<16x16xi32>
    %18 = arith.andi %16, %17 : vector<16x16xi1>
    %19 = vector.shape_cast %18 : vector<16x16xi1> to vector<1x16x16xi1>
    %cst_8 = arith.constant -1.000000e+30 : f32
    %20 = vector.shape_cast %19 : vector<1x16x16xi1> to vector<1x16x16xi1>
    %21 = vector.broadcast %20 : vector<1x16x16xi1> to vector<4x16x16xi1>
    %22 = vector.broadcast %cst_8 : f32 to vector<4x16x16xf32>
    %23 = arith.select %21, %9, %22 : vector<4x16x16xi1>, vector<4x16x16xf32>
    %cst_9 = arith.constant dense<0xFF800000> : vector<4x16xf32>
    %24 = vector.multi_reduction <maximumf>, %23, %cst_9 [2] : vector<4x16x16xf32> to vector<4x16xf32>
    %25 = vector.shape_cast %24 : vector<4x16xf32> to vector<4x16x1xf32>
    %26 = vector.broadcast %25 : vector<4x16x1xf32> to vector<4x16x16xf32>
    %27 = arith.subf %23, %26 : vector<4x16x16xf32>
    %28 = math.exp %27 : vector<4x16x16xf32>
    %cst_10 = arith.constant dense<0.000000e+00> : vector<4x16xf32>
    %29 = vector.multi_reduction <add>, %28, %cst_10 [2] : vector<4x16x16xf32> to vector<4x16xf32>
    %30 = vector.shape_cast %29 : vector<4x16xf32> to vector<4x16x1xf32>
    %31 = tpu.reciprocal %30 {approx = true} : vector<4x16x1xf32> -> vector<4x16x1xf32>
    %32 = vector.broadcast %31 : vector<4x16x1xf32> to vector<4x16x16xf32>
    %33 = arith.mulf %28, %32 : vector<4x16x16xf32>
    "tpu.trace_start"() <{level = 10 : i32, message = "hnm,hmd->hnd"}> : () -> ()
    %cst_11 = arith.constant dense<0.000000e+00> : vector<4x16x8xf32>
    %34 = tpu.matmul %33, %8, %cst_11 {dimension_numbers = #tpu.dot_dimension_numbers<[2], [1], [1], [2], [0, 0, 0, 1, 1, 2], [0], [0]>} : vector<4x16x16xf32>, vector<4x16x8xf32>, vector<4x16x8xf32> -> vector<4x16x8xf32>
    "tpu.trace_stop"() : () -> ()
    %35 = arith.truncf %34 : vector<4x16x8xf32> to vector<4x16x8xbf16>
    "tpu.trace_start"() <{level = 10 : i32, message = "hnd,hdc->hnc"}> : () -> ()
    %cst_12 = arith.constant dense<0.000000e+00> : vector<4x16x32xf32>
    %36 = tpu.matmul %35, %4, %cst_12 {dimension_numbers = #tpu.dot_dimension_numbers<[2], [1], [1], [2], [0, 0, 0, 1, 1, 2], [0], [0]>} : vector<4x16x8xbf16>, vector<4x8x32xbf16>, vector<4x16x32xf32> -> vector<4x16x32xf32>
    "tpu.trace_stop"() : () -> ()
    %cst_13 = arith.constant dense<0.000000e+00> : vector<16x32xf32>
    %37 = vector.multi_reduction <add>, %36, %cst_13 [0] : vector<4x16x32xf32> to vector<16x32xf32>
    %c0_14 = arith.constant 0 : index
    %c0_15 = arith.constant 0 : index
    %38 = vector.load %arg2[%c0_14, %c0_15] : memref<16x32xf32, #tpu.memory_space<vmem>>, vector<16x32xf32>
    tpu.vector_store %arg2[%c0_14, %c0_15], %37 {strides = array<i32>} : memref<16x32xf32, #tpu.memory_space<vmem>>, vector<16x32xf32>,
    return
  }
}

</mosaic_0001>

<llo_original>
// kernel: causal_self_attention.1
$region0: #{causal_self_attention.1}
  #allocation0 [shape = 'u32[]', space=smem, size = 0x4, offset = 0x4, fixed_abs, tag = 'smem constant byte address 0x4 - core index']
  #allocation1 [shape = 'u32[72,128]{1,0:T(1,128)}', space=vmem, size = 0x9000, scoped, tag = 'internal scratch']
  %s0 = inlined_call_operand.vmem [shape: bf16[16,32], index: 0, kind: input, shape index: {}]
  %s1 = inlined_call_operand.vmem [shape: bf16[4,40,32], index: 1, kind: input, shape index: {}]
  %s2 = inlined_call_operand.hbm [shape: f32[16,32], index: 2, kind: output, shape index: {}]
  %s3 = sld [smem:[#allocation0]]
  $region18: #{causal_self_attention.1} parent=0
    _
  %s5 = ssub.s32 1, %s3
  %s6 = scalar_select 0, %s5, %s3
  $region1: #{causal_self_attention.1} parent=0
    #allocation2 [shape = 'u8[8192]{0}', space=vmem, size = 0x2000, scoped, tag = 'output window, operand 0, single buffered']
    #allocation3 [shape = 's32[1]{0}', space=sflag, size = 0x4, scoped, tag = 'scoped memory for causal_self_attention.1']
    %7 = vsyncpa [#allocation3], 0
    // Predicated region
    $region2: #{causal_self_attention.1} parent=1 // pred_check
      _
    $region3: #{causal_self_attention.1} parent=1 // pred_check_branch
      %9 = sbr.rel (0) target = $region5
    $region4: #{causal_self_attention.1} parent=1 // pred_region
      _
    $region5: #{causal_self_attention.1} parent=1 // pred_fallthru
      _
    // Predicated region
    $region6: #{causal_self_attention.1} parent=1 // pred_check
      _
    $region7: #{causal_self_attention.1} parent=1 // pred_check_branch
      %11 = sbr.rel (0) target = $region9
    $region8: #{causal_self_attention.1} parent=1 // pred_region
      _
    $region9: #{causal_self_attention.1} parent=1 // pred_fallthru
      _
    %v13 = vld [vmem:[%s0] sm:$0xf]
    %v14 = vld [vmem:[%s0 + $0x4] sm:$0xf]
    %v15 = vld [vmem:[%s1] sm:$0xf]
    %v16 = vld [vmem:[%s1 + $0x4] sm:$0xf]
    %v17 = vld [vmem:[%s1 + $0x8] sm:$0xf]
    %v18 = vld [vmem:[%s1 + $0xc] sm:$0xf]
    %v19 = vld [vmem:[%s1 + $0x14] sm:$0xf]
    %v20 = vld [vmem:[%s1 + $0x18] sm:$0xf]
    %v21 = vld [vmem:[%s1 + $0x1c] sm:$0xf]
    %v22 = vld [vmem:[%s1 + $0x20] sm:$0xf]
    %v23 = vld [vmem:[%s1 + $0x28] sm:$0xf]
    %v24 = vld [vmem:[%s1 + $0x2c] sm:$0xf]
    %v25 = vld [vmem:[%s1 + $0x30] sm:$0xf]
    %v26 = vld [vmem:[%s1 + $0x34] sm:$0xf]
    %v27 = vld [vmem:[%s1 + $0x3c] sm:$0xf]
    %v28 = vld [vmem:[%s1 + $0x40] sm:$0xf]
    %v29 = vld [vmem:[%s1 + $0x44] sm:$0xf]
    %v30 = vld [vmem:[%s1 + $0x48] sm:$0xf]
    %v31 = vld [vmem:[%s1 + $0x10] sm:$0xf]
    %v32 = vld [vmem:[%s1 + $0x24] sm:$0xf]
    %v33 = vld [vmem:[%s1 + $0x38] sm:$0xf]
    %v34 = vld [vmem:[%s1 + $0x4c] sm:$0xf]
    %v37 = vunpack.c.l.b16 %v13
    %v38 = vunpack.c.l.b16 %v14
    %v39 = vpack.c.b16 %v38, %v37
    %v44 = vunpack.c.l.b16 %v15
    %v45 = vunpack.c.l.b16 %v16
    %v46 = vunpack.c.l.b16 %v17
    %v47 = vunpack.c.l.b16 %v18
    %v48 = vpack.c.b16 %v45, %v44
    %v49 = vpack.c.b16 %v47, %v46
    %vm52 = vcmask 261120
    %v54 = vsel %vm52, %v39, 0
    %56 = vmatpush.bf16.msra.mxu0 0
    %57 = vmatpush.bf16.msra.mxu0 0
    %58 = vmatpush.bf16.msra.mxu0 0
    %59 = vmatpush.bf16.msra.mxu0 0
    %60 = vmatpush.bf16.msra.mxu0 0
    %61 = vmatpush.bf16.msra.mxu0 0
    %62 = vmatpush.bf16.msra.mxu0 %v49
    %63 = vmatpush.bf16.msra.mxu0 %v48
    %64 = vmatmul.bf16.gmra.mxu0 %v54
    %v65 = vpop.f32.mrf.mxu0
    %v66 = vadd.f32 0.0, %v65
    %v67 = vpop.f32.mrf.mxu0
    %v68 = vadd.f32 0.0, %v67
    %69 = vdwg.mxu0
    %v74 = vunpack.c.l.b16 %v19
    %v75 = vunpack.c.l.b16 %v20
    %v76 = vunpack.c.l.b16 %v21
    %v77 = vunpack.c.l.b16 %v22
    %v78 = vpack.c.b16 %v75, %v74
    %v79 = vpack.c.b16 %v77, %v76
    %82 = vmatpush.bf16.msra.mxu0 0
    %83 = vmatpush.bf16.msra.mxu0 0
    %84 = vmatpush.bf16.msra.mxu0 0
    %85 = vmatpush.bf16.msra.mxu0 0
    %86 = vmatpush.bf16.msra.mxu0 0
    %87 = vmatpush.bf16.msra.mxu0 0
    %88 = vmatpush.bf16.msra.mxu0 %v79
    %89 = vmatpush.bf16.msra.mxu0 %v78
    %90 = vmatmul.bf16.gmra.mxu0 %v54
    %v91 = vpop.f32.mrf.mxu0
    %v92 = vadd.f32 0.0, %v91
    %v93 = vpop.f32.mrf.mxu0
    %v94 = vadd.f32 0.0, %v93
    %95 = vdwg.mxu0
    %v100 = vunpack.c.l.b16 %v23
    %v101 = vunpack.c.l.b16 %v24
    %v102 = vunpack.c.l.b16 %v25
    %v103 = vunpack.c.l.b16 %v26
    %v104 = vpack.c.b16 %v101, %v100
    %v105 = vpack.c.b16 %v103, %v102
    %108 = vmatpush.bf16.msra.mxu0 0
    %109 = vmatpush.bf16.msra.mxu0 0
    %110 = vmatpush.bf16.msra.mxu0 0
    %111 = vmatpush.bf16.msra.mxu0 0
    %112 = vmatpush.bf16.msra.mxu0 0
    %113 = vmatpush.bf16.msra.mxu0 0
    %114 = vmatpush.bf16.msra.mxu0 %v105
    %115 = vmatpush.bf16.msra.mxu0 %v104
    %116 = vmatmul.bf16.gmra.mxu0 %v54
    %v117 = vpop.f32.mrf.mxu0
    %v118 = vadd.f32 0.0, %v117
    %v119 = vpop.f32.mrf.mxu0
    %v120 = vadd.f32 0.0, %v119
    %121 = vdwg.mxu0
    %v126 = vunpack.c.l.b16 %v27
    %v127 = vunpack.c.l.b16 %v28
    %v128 = vunpack.c.l.b16 %v29
    %v129 = vunpack.c.l.b16 %v30
    %v130 = vpack.c.b16 %v127, %v126
    %v131 = vpack.c.b16 %v129, %v128
    %134 = vmatpush.bf16.msra.mxu0 0
    %135 = vmatpush.bf16.msra.mxu0 0
    %136 = vmatpush.bf16.msra.mxu0 0
    %137 = vmatpush.bf16.msra.mxu0 0
    %138 = vmatpush.bf16.msra.mxu0 0
    %139 = vmatpush.bf16.msra.mxu0 0
    %140 = vmatpush.bf16.msra.mxu0 %v131
    %141 = vmatpush.bf16.msra.mxu0 %v130
    %142 = vmatmul.bf16.gmra.mxu0 %v54
    %v143 = vpop.f32.mrf.mxu0
    %v144 = vadd.f32 0.0, %v143
    %v145 = vpop.f32.mrf.mxu0
    %v146 = vadd.f32 0.0, %v145
    %147 = vdwg.mxu0
    %150 = vrot.lane.b32.xlu0 %v66, 120
    %v151 = vpop.permute.xlu0 %150
    %152 = vrot.lane.b32.xlu0 %v68, 120
    %v153 = vpop.permute.xlu0 %152
    %vm154 = vcmask 64512
    %v155 = vsel %vm154, %v66, 0
    %v157 = vsel %vm154, %v68, 0
    %v159 = vsel %vm154, %v151, 0
    %v161 = vsel %vm154, %v153, 0
    %163 = vmatpush.xpose.msra.mxu0 0.0
    %164 = vmatpush.xpose.msra.mxu0 0.0
    %165 = vmatpush.xpose.msra.mxu0 0.0
    %166 = vmatpush.xpose.msra.mxu0 0.0
    %167 = vmatpush.xpose.msra.mxu0 0.0
    %168 = vmatpush.xpose.msra.mxu0 0.0
    %169 = vmatpush.xpose.msra.mxu0 0.0
    %170 = vmatpush.xpose.msra.mxu0 0.0
    %171 = vmatpush.xpose.msra.mxu0 0.0
    %172 = vmatpush.xpose.msra.mxu0 0.0
    %173 = vmatpush.xpose.msra.mxu0 0.0
    %174 = vmatpush.xpose.msra.mxu0 0.0
    %175 = vmatpush.xpose.msra.mxu0 0.0
    %176 = vmatpush.xpose.msra.mxu0 0.0
    %177 = vmatpush.xpose.msra.mxu0 %v161
    %178 = vmatpush.xpose.msra.mxu0 %v159
    %179 = vmatmul.f32.gmra.mxu0 %v155
    %v180 = vpop.f32.mrf.mxu0
    %v181 = vadd.f32 0.0, %v180
    %182 = vmatmul.f32.gmra.mxu0 %v157
    %v183 = vpop.f32.mrf.mxu0
    %v184 = vadd.f32 0.0, %v183
    %185 = vdwg.mxu0
    %188 = vrot.lane.b32.xlu0 %v92, 120
    %v189 = vpop.permute.xlu0 %188
    %190 = vrot.lane.b32.xlu0 %v94, 120
    %v191 = vpop.permute.xlu0 %190
    %v192 = vsel %vm154, %v92, 0
    %v194 = vsel %vm154, %v94, 0
    %v196 = vsel %vm154, %v189, 0
    %v198 = vsel %vm154, %v191, 0
    %200 = vmatpush.xpose.msra.mxu0 0.0
    %201 = vmatpush.xpose.msra.mxu0 0.0
    %202 = vmatpush.xpose.msra.mxu0 0.0
    %203 = vmatpush.xpose.msra.mxu0 0.0
    %204 = vmatpush.xpose.msra.mxu0 0.0
    %205 = vmatpush.xpose.msra.mxu0 0.0
    %206 = vmatpush.xpose.msra.mxu0 0.0
    %207 = vmatpush.xpose.msra.mxu0 0.0
    %208 = vmatpush.xpose.msra.mxu0 0.0
    %209 = vmatpush.xpose.msra.mxu0 0.0
    %210 = vmatpush.xpose.msra.mxu0 0.0
    %211 = vmatpush.xpose.msra.mxu0 0.0
    %212 = vmatpush.xpose.msra.mxu0 0.0
    %213 = vmatpush.xpose.msra.mxu0 0.0
    %214 = vmatpush.xpose.msra.mxu0 %v198
    %215 = vmatpush.xpose.msra.mxu0 %v196
    %216 = vmatmul.f32.gmra.mxu0 %v192
    %v217 = vpop.f32.mrf.mxu0
    %v218 = vadd.f32 0.0, %v217
    %219 = vmatmul.f32.gmra.mxu0 %v194
    %v220 = vpop.f32.mrf.mxu0
    %v221 = vadd.f32 0.0, %v220
    %222 = vdwg.mxu0
    %225 = vrot.lane.b32.xlu0 %v118, 120
    %v226 = vpop.permute.xlu0 %225
    %227 = vrot.lane.b32.xlu0 %v120, 120
    %v228 = vpop.permute.xlu0 %227
    %v229 = vsel %vm154, %v118, 0
    %v231 = vsel %vm154, %v120, 0
    %v233 = vsel %vm154, %v226, 0
    %v235 = vsel %vm154, %v228, 0
    %237 = vmatpush.xpose.msra.mxu0 0.0
    %238 = vmatpush.xpose.msra.mxu0 0.0
    %239 = vmatpush.xpose.msra.mxu0 0.0
    %240 = vmatpush.xpose.msra.mxu0 0.0
    %241 = vmatpush.xpose.msra.mxu0 0.0
    %242 = vmatpush.xpose.msra.mxu0 0.0
    %243 = vmatpush.xpose.msra.mxu0 0.0
    %244 = vmatpush.xpose.msra.mxu0 0.0
    %245 = vmatpush.xpose.msra.mxu0 0.0
    %246 = vmatpush.xpose.msra.mxu0 0.0
    %247 = vmatpush.xpose.msra.mxu0 0.0
    %248 = vmatpush.xpose.msra.mxu0 0.0
    %249 = vmatpush.xpose.msra.mxu0 0.0
    %250 = vmatpush.xpose.msra.mxu0 0.0
    %251 = vmatpush.xpose.msra.mxu0 %v235
    %252 = vmatpush.xpose.msra.mxu0 %v233
    %253 = vmatmul.f32.gmra.mxu0 %v229
    %v254 = vpop.f32.mrf.mxu0
    %v255 = vadd.f32 0.0, %v254
    %256 = vmatmul.f32.gmra.mxu0 %v231
    %v257 = vpop.f32.mrf.mxu0
    %v258 = vadd.f32 0.0, %v257
    %259 = vdwg.mxu0
    %262 = vrot.lane.b32.xlu0 %v144, 120
    %v263 = vpop.permute.xlu0 %262
    %264 = vrot.lane.b32.xlu0 %v146, 120
    %v265 = vpop.permute.xlu0 %264
    %v266 = vsel %vm154, %v144, 0
    %v268 = vsel %vm154, %v146, 0
    %v270 = vsel %vm154, %v263, 0
    %v272 = vsel %vm154, %v265, 0
    %274 = vmatpush.xpose.msra.mxu0 0.0
    %275 = vmatpush.xpose.msra.mxu0 0.0
    %276 = vmatpush.xpose.msra.mxu0 0.0
    %277 = vmatpush.xpose.msra.mxu0 0.0
    %278 = vmatpush.xpose.msra.mxu0 0.0
    %279 = vmatpush.xpose.msra.mxu0 0.0
    %280 = vmatpush.xpose.msra.mxu0 0.0
    %281 = vmatpush.xpose.msra.mxu0 0.0
    %282 = vmatpush.xpose.msra.mxu0 0.0
    %283 = vmatpush.xpose.msra.mxu0 0.0
    %284 = vmatpush.xpose.msra.mxu0 0.0
    %285 = vmatpush.xpose.msra.mxu0 0.0
    %286 = vmatpush.xpose.msra.mxu0 0.0
    %287 = vmatpush.xpose.msra.mxu0 0.0
    %288 = vmatpush.xpose.msra.mxu0 %v272
    %289 = vmatpush.xpose.msra.mxu0 %v270
    %290 = vmatmul.f32.gmra.mxu0 %v266
    %v291 = vpop.f32.mrf.mxu0
    %v292 = vadd.f32 0.0, %v291
    %293 = vmatmul.f32.gmra.mxu0 %v268
    %v294 = vpop.f32.mrf.mxu0
    %v295 = vadd.f32 0.0, %v294
    %296 = vdwg.mxu0
    %v297 = vlaneseq
    %v298 = vshrl.u32 %v297, 7
    %v299 = vadd.s32 %v298, 8
    %v300 = vlaneseq
    %v301 = vand.u32 %v300, 127
    %v302 = vshra.s32 %v298, 3
    %v303 = vshra.s32 %v299, 3
    %v304 = vshra.s32 %v301, 3
    %vm305 = vcmp.eq.s32.totalorder %v302, %v304
    %vm306 = vcmp.eq.s32.totalorder %v303, %v304
    %vm307 = vcmp.le.s32.totalorder %v301, %v298
    %vm308 = vcmp.le.s32.totalorder %v301, %v299
    %vm309 = vmand %vm305, %vm307
    %vm310 = vmand %vm306, %vm308
    %v311 = vsel %vm309, 1, 0
    %v312 = vsel %vm310, 1, 0
    %vm313 = vcmp.eq.s32.totalorder %v311, 1
    %vm314 = vcmp.eq.s32.totalorder %v312, 1
    %v315 = vsel %vm313, %v181, -1e+30
    %v316 = vsel %vm314, %v184, -1e+30
    %v317 = vsel %vm313, %v218, -1e+30
    %v318 = vsel %vm314, %v221, -1e+30
    %v319 = vsel %vm313, %v255, -1e+30
    %v320 = vsel %vm314, %v258, -1e+30
    %v321 = vsel %vm313, %v292, -1e+30
    %v322 = vsel %vm314, %v295, -1e+30
    %vm323 = vcmask 130048
    %v324 = vsel %vm323, %v315, -inf
    %325 = vmax.xlane.f32.xlu0 %v324
    %v326 = vpop.xlane.xlu0 %325
    %v327 = vsel %vm323, %v316, -inf
    %328 = vmax.xlane.f32.xlu0 %v327
    %v329 = vpop.xlane.xlu0 %328
    %v330 = vsel %vm323, %v317, -inf
    %331 = vmax.xlane.f32.xlu0 %v330
    %v332 = vpop.xlane.xlu0 %331
    %v333 = vsel %vm323, %v318, -inf
    %334 = vmax.xlane.f32.xlu0 %v333
    %v335 = vpop.xlane.xlu0 %334
    %v336 = vsel %vm323, %v319, -inf
    %337 = vmax.xlane.f32.xlu0 %v336
    %v338 = vpop.xlane.xlu0 %337
    %v339 = vsel %vm323, %v320, -inf
    %340 = vmax.xlane.f32.xlu0 %v339
    %v341 = vpop.xlane.xlu0 %340
    %v342 = vsel %vm323, %v321, -inf
    %343 = vmax.xlane.f32.xlu0 %v342
    %v344 = vpop.xlane.xlu0 %343
    %v345 = vsel %vm323, %v322, -inf
    %346 = vmax.xlane.f32.xlu0 %v345
    %v347 = vpop.xlane.xlu0 %346
    %v348 = vsub.f32 %v315, %v326
    %v349 = vsub.f32 %v316, %v329
    %v350 = vsub.f32 %v317, %v332
    %v351 = vsub.f32 %v318, %v335
    %v352 = vsub.f32 %v319, %v338
    %v353 = vsub.f32 %v320, %v341
    %v354 = vsub.f32 %v321, %v344
    %v355 = vsub.f32 %v322, %v347
    %v356 = vmul.f32 %v348, 1.442695
    %v357 = vpow.pop %v356
    %v358 = vmul.f32 %v349, 1.442695
    %v359 = vpow.pop %v358
    %v360 = vmul.f32 %v350, 1.442695
    %v361 = vpow.pop %v360
    %v362 = vmul.f32 %v351, 1.442695
    %v363 = vpow.pop %v362
    %v364 = vmul.f32 %v352, 1.442695
    %v365 = vpow.pop %v364
    %v366 = vmul.f32 %v353, 1.442695
    %v367 = vpow.pop %v366
    %v368 = vmul.f32 %v354, 1.442695
    %v369 = vpow.pop %v368
    %v370 = vmul.f32 %v355, 1.442695
    %v371 = vpow.pop %v370
    %v372 = vsel %vm323, %v357, 0.0
    %373 = vadd.xlane.f32.xlu0 %v372
    %v374 = vpop.xlane.xlu0 %373
    %v375 = vsel %vm323, %v359, 0.0
    %376 = vadd.xlane.f32.xlu0 %v375
    %v377 = vpop.xlane.xlu0 %376
    %v378 = vsel %vm323, %v361, 0.0
    %379 = vadd.xlane.f32.xlu0 %v378
    %v380 = vpop.xlane.xlu0 %379
    %v381 = vsel %vm323, %v363, 0.0
    %382 = vadd.xlane.f32.xlu0 %v381
    %v383 = vpop.xlane.xlu0 %382
    %v384 = vsel %vm323, %v365, 0.0
    %385 = vadd.xlane.f32.xlu0 %v384
    %v386 = vpop.xlane.xlu0 %385
    %v387 = vsel %vm323, %v367, 0.0
    %388 = vadd.xlane.f32.xlu0 %v387
    %v389 = vpop.xlane.xlu0 %388
    %v390 = vsel %vm323, %v369, 0.0
    %391 = vadd.xlane.f32.xlu0 %v390
    %v392 = vpop.xlane.xlu0 %391
    %v393 = vsel %vm323, %v371, 0.0
    %394 = vadd.xlane.f32.xlu0 %v393
    %v395 = vpop.xlane.xlu0 %394
    %v396 = vrcp.pop %v374
    %v397 = vrcp.pop %v377
    %v398 = vrcp.pop %v380
    %v399 = vrcp.pop %v383
    %v400 = vrcp.pop %v386
    %v401 = vrcp.pop %v389
    %v402 = vrcp.pop %v392
    %v403 = vrcp.pop %v395
    %v404 = vmul.f32 %v357, %v396
    %v405 = vmul.f32 %v359, %v397
    %v406 = vmul.f32 %v361, %v398
    %v407 = vmul.f32 %v363, %v399
    %v408 = vmul.f32 %v365, %v400
    %v409 = vmul.f32 %v367, %v401
    %v410 = vmul.f32 %v369, %v402
    %v411 = vmul.f32 %v371, %v403
    %412 = vrot.lane.b32.xlu0 %v66, 112
    %v413 = vpop.permute.xlu0 %412
    %414 = vrot.lane.b32.xlu0 %v68, 112
    %v415 = vpop.permute.xlu0 %414
    %v419 = vsel %vm323, %v404, 0
    %v422 = vsel %vm323, %v405, 0
    %424 = vmatpush.msra.mxu0 0.0
    %425 = vmatpush.msra.mxu0 0.0
    %426 = vmatpush.msra.mxu0 0.0
    %427 = vmatpush.msra.mxu0 0.0
    %428 = vmatpush.msra.mxu0 0.0
    %429 = vmatpush.msra.mxu0 0.0
    %430 = vmatpush.msra.mxu0 0.0
    %431 = vmatpush.msra.mxu0 0.0
    %432 = vmatpush.msra.mxu0 0.0
    %433 = vmatpush.msra.mxu0 0.0
    %434 = vmatpush.msra.mxu0 0.0
    %435 = vmatpush.msra.mxu0 0.0
    %436 = vmatpush.msra.mxu0 0.0
    %437 = vmatpush.msra.mxu0 0.0
    %438 = vmatpush.msra.mxu0 %v415
    %439 = vmatpush.msra.mxu0 %v413
    %440 = vmatmul.f32.gmra.mxu0 %v419
    %v441 = vpop.f32.mrf.mxu0
    %v442 = vadd.f32 0.0, %v441
    %443 = vmatmul.f32.gmra.mxu0 %v422
    %v444 = vpop.f32.mrf.mxu0
    %v445 = vadd.f32 0.0, %v444
    %446 = vdwg.mxu0
    %447 = vrot.lane.b32.xlu0 %v92, 112
    %v448 = vpop.permute.xlu0 %447
    %449 = vrot.lane.b32.xlu0 %v94, 112
    %v450 = vpop.permute.xlu0 %449
    %v454 = vsel %vm323, %v406, 0
    %v457 = vsel %vm323, %v407, 0
    %459 = vmatpush.msra.mxu0 0.0
    %460 = vmatpush.msra.mxu0 0.0
    %461 = vmatpush.msra.mxu0 0.0
    %462 = vmatpush.msra.mxu0 0.0
    %463 = vmatpush.msra.mxu0 0.0
    %464 = vmatpush.msra.mxu0 0.0
    %465 = vmatpush.msra.mxu0 0.0
    %466 = vmatpush.msra.mxu0 0.0
    %467 = vmatpush.msra.mxu0 0.0
    %468 = vmatpush.msra.mxu0 0.0
    %469 = vmatpush.msra.mxu0 0.0
    %470 = vmatpush.msra.mxu0 0.0
    %471 = vmatpush.msra.mxu0 0.0
    %472 = vmatpush.msra.mxu0 0.0
    %473 = vmatpush.msra.mxu0 %v450
    %474 = vmatpush.msra.mxu0 %v448
    %475 = vmatmul.f32.gmra.mxu0 %v454
    %v476 = vpop.f32.mrf.mxu0
    %v477 = vadd.f32 0.0, %v476
    %478 = vmatmul.f32.gmra.mxu0 %v457
    %v479 = vpop.f32.mrf.mxu0
    %v480 = vadd.f32 0.0, %v479
    %481 = vdwg.mxu0
    %482 = vrot.lane.b32.xlu0 %v118, 112
    %v483 = vpop.permute.xlu0 %482
    %484 = vrot.lane.b32.xlu0 %v120, 112
    %v485 = vpop.permute.xlu0 %484
    %v489 = vsel %vm323, %v408, 0
    %v492 = vsel %vm323, %v409, 0
    %494 = vmatpush.msra.mxu0 0.0
    %495 = vmatpush.msra.mxu0 0.0
    %496 = vmatpush.msra.mxu0 0.0
    %497 = vmatpush.msra.mxu0 0.0
    %498 = vmatpush.msra.mxu0 0.0
    %499 = vmatpush.msra.mxu0 0.0
    %500 = vmatpush.msra.mxu0 0.0
    %501 = vmatpush.msra.mxu0 0.0
    %502 = vmatpush.msra.mxu0 0.0
    %503 = vmatpush.msra.mxu0 0.0
    %504 = vmatpush.msra.mxu0 0.0
    %505 = vmatpush.msra.mxu0 0.0
    %506 = vmatpush.msra.mxu0 0.0
    %507 = vmatpush.msra.mxu0 0.0
    %508 = vmatpush.msra.mxu0 %v485
    %509 = vmatpush.msra.mxu0 %v483
    %510 = vmatmul.f32.gmra.mxu0 %v489
    %v511 = vpop.f32.mrf.mxu0
    %v512 = vadd.f32 0.0, %v511
    %513 = vmatmul.f32.gmra.mxu0 %v492
    %v514 = vpop.f32.mrf.mxu0
    %v515 = vadd.f32 0.0, %v514
    %516 = vdwg.mxu0
    %517 = vrot.lane.b32.xlu0 %v144, 112
    %v518 = vpop.permute.xlu0 %517
    %519 = vrot.lane.b32.xlu0 %v146, 112
    %v520 = vpop.permute.xlu0 %519
    %v524 = vsel %vm323, %v410, 0
    %v527 = vsel %vm323, %v411, 0
    %529 = vmatpush.msra.mxu0 0.0
    %530 = vmatpush.msra.mxu0 0.0
    %531 = vmatpush.msra.mxu0 0.0
    %532 = vmatpush.msra.mxu0 0.0
    %533 = vmatpush.msra.mxu0 0.0
    %534 = vmatpush.msra.mxu0 0.0
    %535 = vmatpush.msra.mxu0 0.0
    %536 = vmatpush.msra.mxu0 0.0
    %537 = vmatpush.msra.mxu0 0.0
    %538 = vmatpush.msra.mxu0 0.0
    %539 = vmatpush.msra.mxu0 0.0
    %540 = vmatpush.msra.mxu0 0.0
    %541 = vmatpush.msra.mxu0 0.0
    %542 = vmatpush.msra.mxu0 0.0
    %543 = vmatpush.msra.mxu0 %v520
    %544 = vmatpush.msra.mxu0 %v518
    %545 = vmatmul.f32.gmra.mxu0 %v524
    %v546 = vpop.f32.mrf.mxu0
    %v547 = vadd.f32 0.0, %v546
    %548 = vmatmul.f32.gmra.mxu0 %v527
    %v549 = vpop.f32.mrf.mxu0
    %v550 = vadd.f32 0.0, %v549
    %551 = vdwg.mxu0
    %v552 = vpack.c.bf16 %v442, %v442
    %v553 = vpack.c.bf16 %v445, %v445
    %v554 = vpack.c.bf16 %v477, %v477
    %v555 = vpack.c.bf16 %v480, %v480
    %v556 = vpack.c.bf16 %v512, %v512
    %v557 = vpack.c.bf16 %v515, %v515
    %v558 = vpack.c.bf16 %v547, %v547
    %v559 = vpack.c.bf16 %v550, %v550
    %v562 = vunpack.c.l.b16 %v552
    %v563 = vunpack.c.l.b16 %v553
    %v564 = vpack.c.b16 %v563, %v562
    %v566 = vsel %vm154, %v564, 0
    %vm568 = vcmask 1043456
    %v570 = vsel %vm568, %v31, 0
    %572 = vmatpush.bf16.msra.mxu0 0
    %573 = vmatpush.bf16.msra.mxu0 0
    %574 = vmatpush.bf16.msra.mxu0 0
    %575 = vmatpush.bf16.msra.mxu0 0
    %576 = vmatpush.bf16.msra.mxu0 0
    %577 = vmatpush.bf16.msra.mxu0 0
    %578 = vmatpush.bf16.msra.mxu0 0
    %579 = vmatpush.bf16.msra.mxu0 %v570
    %580 = vmatmul.bf16.gmra.mxu0 %v566
    %v581 = vpop.f32.mrf.mxu0
    %v582 = vadd.f32 0.0, %v581
    %v583 = vpop.f32.mrf.mxu0
    %v584 = vadd.f32 0.0, %v583
    %585 = vdwg.mxu0
    %v588 = vunpack.c.l.b16 %v554
    %v589 = vunpack.c.l.b16 %v555
    %v590 = vpack.c.b16 %v589, %v588
    %v592 = vsel %vm154, %v590, 0
    %v595 = vsel %vm568, %v32, 0
    %597 = vmatpush.bf16.msra.mxu0 0
    %598 = vmatpush.bf16.msra.mxu0 0
    %599 = vmatpush.bf16.msra.mxu0 0
    %600 = vmatpush.bf16.msra.mxu0 0
    %601 = vmatpush.bf16.msra.mxu0 0
    %602 = vmatpush.bf16.msra.mxu0 0
    %603 = vmatpush.bf16.msra.mxu0 0
    %604 = vmatpush.bf16.msra.mxu0 %v595
    %605 = vmatmul.bf16.gmra.mxu0 %v592
    %v606 = vpop.f32.mrf.mxu0
    %v607 = vadd.f32 0.0, %v606
    %v608 = vpop.f32.mrf.mxu0
    %v609 = vadd.f32 0.0, %v608
    %610 = vdwg.mxu0
    %v613 = vunpack.c.l.b16 %v556
    %v614 = vunpack.c.l.b16 %v557
    %v615 = vpack.c.b16 %v614, %v613
    %v617 = vsel %vm154, %v615, 0
    %v620 = vsel %vm568, %v33, 0
    %622 = vmatpush.bf16.msra.mxu0 0
    %623 = vmatpush.bf16.msra.mxu0 0
    %624 = vmatpush.bf16.msra.mxu0 0
    %625 = vmatpush.bf16.msra.mxu0 0
    %626 = vmatpush.bf16.msra.mxu0 0
    %627 = vmatpush.bf16.msra.mxu0 0
    %628 = vmatpush.bf16.msra.mxu0 0
    %629 = vmatpush.bf16.msra.mxu0 %v620
    %630 = vmatmul.bf16.gmra.mxu0 %v617
    %v631 = vpop.f32.mrf.mxu0
    %v632 = vadd.f32 0.0, %v631
    %v633 = vpop.f32.mrf.mxu0
    %v634 = vadd.f32 0.0, %v633
    %635 = vdwg.mxu0
    %v638 = vunpack.c.l.b16 %v558
    %v639 = vunpack.c.l.b16 %v559
    %v640 = vpack.c.b16 %v639, %v638
    %v642 = vsel %vm154, %v640, 0
    %v645 = vsel %vm568, %v34, 0
    %647 = vmatpush.bf16.msra.mxu0 0
    %648 = vmatpush.bf16.msra.mxu0 0
    %649 = vmatpush.bf16.msra.mxu0 0
    %650 = vmatpush.bf16.msra.mxu0 0
    %651 = vmatpush.bf16.msra.mxu0 0
    %652 = vmatpush.bf16.msra.mxu0 0
    %653 = vmatpush.bf16.msra.mxu0 0
    %654 = vmatpush.bf16.msra.mxu0 %v645
    %655 = vmatmul.bf16.gmra.mxu0 %v642
    %v656 = vpop.f32.mrf.mxu0
    %v657 = vadd.f32 0.0, %v656
    %v658 = vpop.f32.mrf.mxu0
    %v659 = vadd.f32 0.0, %v658
    %660 = vdwg.mxu0
    %v661 = vsel %vm52, %v582, 0.0
    %v662 = vsel %vm52, %v607, 0.0
    %v663 = vadd.f32 %v661, %v662
    %v664 = vsel %vm52, %v632, 0.0
    %v665 = vadd.f32 %v663, %v664
    %v666 = vsel %vm52, %v657, 0.0
    %v667 = vadd.f32 %v665, %v666
    %v668 = vsel %vm52, %v584, 0.0
    %v669 = vsel %vm52, %v609, 0.0
    %v670 = vadd.f32 %v668, %v669
    %v671 = vsel %vm52, %v634, 0.0
    %v672 = vadd.f32 %v670, %v671
    %v673 = vsel %vm52, %v659, 0.0
    %v674 = vadd.f32 %v672, %v673
    %675 = vst.msk [vmem:[#allocation2] sm:$0xff] %vm52, %v667
    %676 = vst.msk [vmem:[#allocation2 + $0x8] sm:$0xff] %vm52, %v674
    // Predicated region
    $region10: #{causal_self_attention.1} parent=1 // pred_check
      _
    $region11: #{causal_self_attention.1} parent=1 // pred_check_branch
      %678 = sbr.rel (0) target = $region13
    $region12: #{causal_self_attention.1} parent=1 // pred_region
      %680 = vsyncadd [#allocation3], 0
      %s681 = sshll.u32 [#allocation2], 4
      %s682 = int_to_ptr.vmem [resolvable:$true] %s681
      %s683 = sshll.u32 %s2, 4
      %s684 = int_to_ptr.hbm [resolvable:$true] %s683
      %689 = dma.vmem_to_hbm [thread:$0]  %s682, 256, %s684, [#allocation3], 128, 128, 8
    $region13: #{causal_self_attention.1} parent=1 // pred_fallthru
      _
    // Predicated region
    $region14: #{causal_self_attention.1} parent=1 // pred_check
      _
    $region15: #{causal_self_attention.1} parent=1 // pred_check_branch
      %691 = sbr.rel (0) target = $region17
    $region16: #{causal_self_attention.1} parent=1 // pred_region
      %693 = dma.done [#allocation3], 256
    $region17: #{causal_self_attention.1} parent=1 // pred_fallthru
      _
    %694 = vsyncpa [#allocation3], 1

</llo_original>
